<compile_context>
chip_gen: v5e
topology: v5e:2x2
jax: 0.10.0
libtpu: 0.0.40
codegen_flags: <defaults>
</compile_context>

<pallas_src>
import functools

import jax
import jax.numpy as jnp
from jax.experimental import pallas as pl
from jax.experimental.pallas import tpu as pltpu


def _round_up(x, m):
    return (x + m - 1) // m * m


def _make_kernel(num_hidden, padded_widths, n_head_pad):
    """padded_widths = [D_in_pad, H1_pad, ..., HL_pad] (all multiples of 128)."""

    def kernel(*refs):
        board_ref = refs[0]                       # (block_B, cells) f32
        e_ref = refs[1]                           # (cells, D_in_pad) bf16
        w_refs = refs[2:2 + num_hidden]           # (K_pad, N_pad) bf16 each
        whead_ref = refs[2 + num_hidden]          # (H_last_pad, n_head_pad) bf16
        ball_ref = refs[3 + num_hidden]           # (num_hidden+1, max_w) f32
        out_ref = refs[4 + num_hidden]            # (block_B, n_head_pad) f32

        # --- Rebuild one-hot in VMEM: expand each board cell to its 8 lanes via a
        #     tiny matmul, then compare against the per-lane class index. Exact. ---
        board = board_ref[...].astype(jnp.bfloat16)                       # (Bb, cells)
        exp = jnp.dot(board, e_ref[...], preferred_element_type=jnp.float32)
        cls = jax.lax.broadcasted_iota(jnp.int32, exp.shape, 1) & 7       # lane % 8
        h = jnp.where(exp == cls.astype(jnp.float32), 1.0, 0.0).astype(jnp.bfloat16)

        # --- Hidden MLP: bf16 MXU matmuls, f32 accumulation, f32 bias/ReLU. ---
        for li in range(num_hidden):
            w = w_refs[li][...]
            npad = padded_widths[li + 1]
            b = ball_ref[li:li + 1, 0:npad]                               # (1, N_pad) f32
            z = jnp.dot(h, w, preferred_element_type=jnp.float32) + b
            h = jnp.maximum(z, 0.0).astype(jnp.bfloat16)

        # --- Fused head: column 0 = state value, columns 1..1+A = advantages,
        #     remaining columns are zero padding (lane-dense 128-wide store). ---
        bh = ball_ref[num_hidden:num_hidden + 1, 0:n_head_pad]
        head = jnp.dot(h, whead_ref[...], preferred_element_type=jnp.float32) + bh
        sv = head[:, 0:1]                                                 # (Bb, 1)
        col = jax.lax.broadcasted_iota(jnp.int32, head.shape, 1)
        # Dueling combine: action columns get +state_value, column 0 stays sv.
        out_ref[...] = jnp.where(col >= 1, head + sv, head)

    return kernel


def init_params(key, size_x, size_y, hidden_widths, random_heads=False):
    """Plain-f32 parameters with the PyTorch module's shapes / init scheme."""
    input_width = size_x * size_y * 8
    widths = [input_width] + list(hidden_widths)
    num_actions = size_x * size_y

    hidden = []
    for i in range(len(widths) - 1):
        key, kw, kb = jax.random.split(key, 3)
        bound = 1.0 / (widths[i] ** 0.5)
        w = jax.random.uniform(kw, (widths[i], widths[i + 1]),
                               minval=-bound, maxval=bound, dtype=jnp.float32)
        b = jax.random.uniform(kb, (widths[i + 1],),
                               minval=-bound, maxval=bound, dtype=jnp.float32)
        hidden.append((w, b))

    last = widths[-1]
    if random_heads:
        key, k1, k2, k3, k4 = jax.random.split(key, 5)
        bound = 1.0 / (last ** 0.5)
        wv = jax.random.uniform(k1, (last, 1), minval=-bound, maxval=bound, dtype=jnp.float32)
        bv = jax.random.uniform(k2, (1,), minval=-bound, maxval=bound, dtype=jnp.float32)
        wa = jax.random.uniform(k3, (last, num_actions), minval=-bound, maxval=bound, dtype=jnp.float32)
        ba = jax.random.uniform(k4, (num_actions,), minval=-bound, maxval=bound, dtype=jnp.float32)
    else:
        # Matches the PyTorch __init__: heads zero-initialized.
        wv = jnp.zeros((last, 1), jnp.float32)
        bv = jnp.zeros((1,), jnp.float32)
        wa = jnp.zeros((last, num_actions), jnp.float32)
        ba = jnp.zeros((num_actions,), jnp.float32)

    return {"hidden": hidden, "wv": wv, "bv": bv, "wa": wa, "ba": ba}


def prepare_kernel_params(params, size_x, size_y):
    """Pad/fuse/cast the f32 params into the lane-aligned bf16 kernel layout."""
    num_cells = size_x * size_y
    num_actions = num_cells
    d_in = num_cells * 8

    widths = [d_in] + [w.shape[1] for w, _ in params["hidden"]]
    padded = [_round_up(v, 128) for v in widths]
    n_head = 1 + num_actions
    n_head_pad = _round_up(n_head, 128)

    # Expansion matrix: cell c -> lanes [8c, 8c+8) (one-hot rebuild inside kernel).
    cells = jnp.arange(num_cells)[:, None]
    cols = jnp.arange(padded[0])[None, :]
    e = (cols // 8 == cells).astype(jnp.bfloat16)

    ws = []
    for i, (w, _) in enumerate(params["hidden"]):
        wp = jnp.zeros((padded[i], padded[i + 1]), jnp.float32)
        wp = wp.at[: w.shape[0], : w.shape[1]].set(w)
        ws.append(wp.astype(jnp.bfloat16))

    # Fused head weight: [ state-value | advantages | zero padding ] -> 128 lanes.
    last = widths[-1]
    w_head = jnp.zeros((padded[-1], n_head_pad), jnp.float32)
    w_head = w_head.at[:last, 0:1].set(params["wv"])
    w_head = w_head.at[:last, 1:1 + num_actions].set(params["wa"])
    w_head = w_head.astype(jnp.bfloat16)

    # All biases stacked into one lane-padded f32 array (single resident DMA).
    num_hidden = len(params["hidden"])
    max_w = max(list(padded[1:]) + [n_head_pad])
    b_all = jnp.zeros((num_hidden + 1, max_w), jnp.float32)
    for i, (_, b) in enumerate(params["hidden"]):
        b_all = b_all.at[i, : b.shape[-1]].set(b.reshape(-1))
    b_all = b_all.at[num_hidden, 0].set(params["bv"].reshape(()))
    b_all = b_all.at[num_hidden, 1:1 + num_actions].set(params["ba"].reshape(-1))

    return {"e": e, "ws": tuple(ws), "w_head": w_head, "b_all": b_all}


@functools.partial(jax.jit, static_argnames=("size_x", "size_y"))
def dueling_forward(x_int, kparams, *, size_x, size_y):
    num_cells = size_x * size_y
    num_actions = num_cells
    B = x_int.shape[0]

    e = kparams["e"]
    ws = kparams["ws"]
    w_head = kparams["w_head"]
    b_all = kparams["b_all"]
    num_hidden = len(ws)
    padded_widths = (e.shape[1],) + tuple(w.shape[1] for w in ws)
    n_head_pad = w_head.shape[1]

    # Batch tiling: sublane-aligned block, pipelined over a (parallel) grid.
    block_b = 256 if B >= 256 else _round_up(max(B, 1), 8)
    b_pad = _round_up(B, block_b)

    board = x_int.reshape(B, num_cells).astype(jnp.float32)
    if b_pad != B:
        board = jnp.pad(board, ((0, b_pad - B), (0, 0)))

    kernel = _make_kernel(num_hidden, padded_widths, n_head_pad)

    in_specs = [
        pl.BlockSpec((block_b, num_cells), lambda i: (i, 0)),            # board (tiled)
        pl.BlockSpec((num_cells, padded_widths[0]), lambda i: (0, 0)),   # expand matrix
    ]
    for w in ws:
        in_specs.append(pl.BlockSpec(w.shape, lambda i: (0, 0)))         # resident weights
    in_specs.append(pl.BlockSpec(w_head.shape, lambda i: (0, 0)))        # fused head weight
    in_specs.append(pl.BlockSpec(b_all.shape, lambda i: (0, 0)))         # stacked biases

    out = pl.pallas_call(
        kernel,
        out_shape=jax.ShapeDtypeStruct((b_pad, n_head_pad), jnp.float32),
        grid=(b_pad // block_b,),
        in_specs=in_specs,
        out_specs=pl.BlockSpec((block_b, n_head_pad), lambda i: (i, 0)),
        compiler_params=pltpu.CompilerParams(
            dimension_semantics=("parallel",)),
    )(board, e, *ws, w_head, b_all)

    state_value = out[:B, 0]                       # (B,)
    action_value = out[:B, 1:1 + num_actions]      # (B, A) = advantage + state value
    return state_value, action_value


def reference_forward(x_int, params, size_x, size_y, emulate_bf16=True):
    """Pure-JAX reference. emulate_bf16=True mirrors the kernel's bf16 MXU operands."""
    B = x_int.shape[0]
    x = jax.nn.one_hot(x_int.astype(jnp.int32).reshape(B, -1), 8,
                       dtype=jnp.float32).reshape(B, -1)
    cast = (lambda v: v.astype(jnp.bfloat16).astype(jnp.float32)) if emulate_bf16 \
        else (lambda v: v)
    h = x
    for w, b in params["hidden"]:
        h = jnp.maximum(cast(h) @ cast(w) + b, 0.0)
    sv = (cast(h) @ cast(params["wv"]) + params["bv"])[:, 0]
    aa = cast(h) @ cast(params["wa"]) + params["ba"]
    return sv, aa + sv[:, None]


if __name__ == "__main__":
    size_x, size_y = 4, 4
    hidden_widths = [64, 32]
    batch = 2

    key = jax.random.PRNGKey(0)
    key, kx, kp, kp2 = jax.random.split(key, 4)

    # Integer board states in [0, 8), as expected by F.one_hot(num_classes=8).
    x_int = jax.random.randint(kx, (batch, size_x, size_y), 0, 8, dtype=jnp.int32)

    # 1) Module-faithful init (zero heads, like the PyTorch __init__).
    params = init_params(kp, size_x, size_y, hidden_widths, random_heads=False)
    kparams = prepare_kernel_params(params, size_x, size_y)
    sv, av = dueling_forward(x_int, kparams, size_x=size_x, size_y=size_y)
    jax.block_until_ready((sv, av))
    sv_ref, av_ref = reference_forward(x_int, params, size_x, size_y, emulate_bf16=True)
    assert sv.shape == (batch,)
    assert av.shape == (batch, size_x * size_y)
    assert jnp.allclose(sv, sv_ref, atol=2e-5, rtol=2e-5)
    assert jnp.allclose(av, av_ref, atol=2e-5, rtol=2e-5)

    # 2) Non-zero heads to actually exercise the fused head matmul numerics.
    params2 = init_params(kp2, size_x, size_y, hidden_widths, random_heads=True)
    kparams2 = prepare_kernel_params(params2, size_x, size_y)
    sv2, av2 = dueling_forward(x_int, kparams2, size_x=size_x, size_y=size_y)
    jax.block_until_ready((sv2, av2))
    sv2_ref, av2_ref = reference_forward(x_int, params2, size_x, size_y, emulate_bf16=True)
    assert jnp.allclose(sv2, sv2_ref, atol=2e-5, rtol=2e-5)
    assert jnp.allclose(av2, av2_ref, atol=2e-5, rtol=2e-5)
    # Loose check against pure-f32 math (bounds the bf16 weight/activation rounding).
    sv2_f32, av2_f32 = reference_forward(x_int, params2, size_x, size_y, emulate_bf16=False)
    assert jnp.allclose(sv2, sv2_f32, atol=5e-2, rtol=5e-2)
    assert jnp.allclose(av2, av2_f32, atol=5e-2, rtol=5e-2)

    print("KERNEL_OK")
</pallas_src>

<mosaic_0001>
module attributes {stable_mosaic.version = 11 : i64} {
  func.func @kernel(%arg0: i32, %arg1: memref<8x16xf32, #tpu.memory_space<vmem>>, %arg2: memref<16x128xbf16, #tpu.memory_space<vmem>>, %arg3: memref<128x128xbf16, #tpu.memory_space<vmem>>, %arg4: memref<128x128xbf16, #tpu.memory_space<vmem>>, %arg5: memref<128x128xbf16, #tpu.memory_space<vmem>>, %arg6: memref<3x128xf32, #tpu.memory_space<vmem>>, %arg7: memref<8x128xf32, #tpu.memory_space<vmem>>) attributes {dimension_semantics = [#tpu.dimension_semantics<parallel>], iteration_bounds = array<i64: 1>, scalar_prefetch = 0 : i64, scratch_operands = 0 : i64, tpu.core_type = #tpu.core_type<tc>, window_params = [{transform_indices = @transform_0, window_bounds = array<i64: 8, 16>}, {pipeline_mode = #tpu.pipeline_mode<synchronous>, transform_indices = @transform_1, window_bounds = array<i64: 16, 128>}, {pipeline_mode = #tpu.pipeline_mode<synchronous>, transform_indices = @transform_2, window_bounds = array<i64: 128, 128>}, {pipeline_mode = #tpu.pipeline_mode<synchronous>, transform_indices = @transform_3, window_bounds = array<i64: 128, 128>}, {pipeline_mode = #tpu.pipeline_mode<synchronous>, transform_indices = @transform_4, window_bounds = array<i64: 128, 128>}, {pipeline_mode = #tpu.pipeline_mode<synchronous>, transform_indices = @transform_5, window_bounds = array<i64: 3, 128>}, {transform_indices = @transform_6, window_bounds = array<i64: 8, 128>}]} {
    %c0 = arith.constant 0 : index
    %c0_0 = arith.constant 0 : index
    %0 = vector.load %arg1[%c0, %c0_0] : memref<8x16xf32, #tpu.memory_space<vmem>>, vector<8x16xf32>
    %1 = arith.truncf %0 : vector<8x16xf32> to vector<8x16xbf16>
    %c0_1 = arith.constant 0 : index
    %c0_2 = arith.constant 0 : index
    %2 = vector.load %arg2[%c0_1, %c0_2] : memref<16x128xbf16, #tpu.memory_space<vmem>>, vector<16x128xbf16>
    %cst = arith.constant dense<0.000000e+00> : vector<8x128xf32>
    %3 = tpu.matmul %1, %2, %cst {dimension_numbers = #tpu.dot_dimension_numbers<[1], [0], [0], [1], [0, 0, 1, 1], [], []>} : vector<8x16xbf16>, vector<16x128xbf16>, vector<8x128xf32> -> vector<8x128xf32>
    %4 = tpu.iota {dimensions = array<i32: 1>} : vector<8x128xi32>
    %c7_i32 = arith.constant 7 : i32
    %5 = vector.broadcast %c7_i32 : i32 to vector<8x128xi32>
    %6 = arith.andi %4, %5 : vector<8x128xi32>
    %7 = arith.sitofp %6 : vector<8x128xi32> to vector<8x128xf32>
    %8 = arith.cmpf oeq, %3, %7 : vector<8x128xf32>
    %cst_3 = arith.constant 1.000000e+00 : f32
    %cst_4 = arith.constant 0.000000e+00 : f32
    %9 = vector.broadcast %cst_3 : f32 to vector<8x128xf32>
    %10 = vector.broadcast %cst_4 : f32 to vector<8x128xf32>
    %11 = arith.select %8, %9, %10 : vector<8x128xi1>, vector<8x128xf32>
    %12 = arith.truncf %11 : vector<8x128xf32> to vector<8x128xbf16>
    %c0_5 = arith.constant 0 : index
    %c0_6 = arith.constant 0 : index
    %13 = vector.load %arg3[%c0_5, %c0_6] : memref<128x128xbf16, #tpu.memory_space<vmem>>, vector<128x128xbf16>
    %c0_7 = arith.constant 0 : index
    %c0_8 = arith.constant 0 : index
    %14 = vector.load %arg6[%c0_7, %c0_8] : memref<3x128xf32, #tpu.memory_space<vmem>>, vector<1x128xf32>
    %cst_9 = arith.constant dense<0.000000e+00> : vector<8x128xf32>
    %15 = tpu.matmul %12, %13, %cst_9 {dimension_numbers = #tpu.dot_dimension_numbers<[1], [0], [0], [1], [0, 0, 1, 1], [], []>} : vector<8x128xbf16>, vector<128x128xbf16>, vector<8x128xf32> -> vector<8x128xf32>
    %16 = vector.broadcast %14 : vector<1x128xf32> to vector<8x128xf32>
    %17 = arith.addf %15, %16 : vector<8x128xf32>
    %cst_10 = arith.constant 0.000000e+00 : f32
    %18 = vector.broadcast %cst_10 : f32 to vector<8x128xf32>
    %19 = arith.maximumf %17, %18 : vector<8x128xf32>
    %20 = arith.truncf %19 : vector<8x128xf32> to vector<8x128xbf16>
    %c0_11 = arith.constant 0 : index
    %c0_12 = arith.constant 0 : index
    %21 = vector.load %arg4[%c0_11, %c0_12] : memref<128x128xbf16, #tpu.memory_space<vmem>>, vector<128x128xbf16>
    %c1 = arith.constant 1 : index
    %c0_13 = arith.constant 0 : index
    %22 = vector.load %arg6[%c1, %c0_13] : memref<3x128xf32, #tpu.memory_space<vmem>>, vector<1x128xf32>
    %cst_14 = arith.constant dense<0.000000e+00> : vector<8x128xf32>
    %23 = tpu.matmul %20, %21, %cst_14 {dimension_numbers = #tpu.dot_dimension_numbers<[1], [0], [0], [1], [0, 0, 1, 1], [], []>} : vector<8x128xbf16>, vector<128x128xbf16>, vector<8x128xf32> -> vector<8x128xf32>
    %24 = vector.broadcast %22 : vector<1x128xf32> to vector<8x128xf32>
    %25 = arith.addf %23, %24 : vector<8x128xf32>
    %cst_15 = arith.constant 0.000000e+00 : f32
    %26 = vector.broadcast %cst_15 : f32 to vector<8x128xf32>
    %27 = arith.maximumf %25, %26 : vector<8x128xf32>
    %28 = arith.truncf %27 : vector<8x128xf32> to vector<8x128xbf16>
    %c2 = arith.constant 2 : index
    %c0_16 = arith.constant 0 : index
    %29 = vector.load %arg6[%c2, %c0_16] : memref<3x128xf32, #tpu.memory_space<vmem>>, vector<1x128xf32>
    %c0_17 = arith.constant 0 : index
    %c0_18 = arith.constant 0 : index
    %30 = vector.load %arg5[%c0_17, %c0_18] : memref<128x128xbf16, #tpu.memory_space<vmem>>, vector<128x128xbf16>
    %cst_19 = arith.constant dense<0.000000e+00> : vector<8x128xf32>
    %31 = tpu.matmul %28, %30, %cst_19 {dimension_numbers = #tpu.dot_dimension_numbers<[1], [0], [0], [1], [0, 0, 1, 1], [], []>} : vector<8x128xbf16>, vector<128x128xbf16>, vector<8x128xf32> -> vector<8x128xf32>
    %32 = vector.broadcast %29 : vector<1x128xf32> to vector<8x128xf32>
    %33 = arith.addf %31, %32 : vector<8x128xf32>
    %34 = vector.extract_strided_slice %33 {offsets = [0, 0], sizes = [8, 1], strides = [1, 1]} : vector<8x128xf32> to vector<8x1xf32>
    %35 = tpu.iota {dimensions = array<i32: 1>} : vector<8x128xi32>
    %c1_i32 = arith.constant 1 : i32
    %36 = vector.broadcast %c1_i32 : i32 to vector<8x128xi32>
    %37 = arith.cmpi sge, %35, %36 : vector<8x128xi32>
    %38 = vector.broadcast %34 : vector<8x1xf32> to vector<8x128xf32>
    %39 = arith.addf %33, %38 : vector<8x128xf32>
    %40 = arith.select %37, %39, %33 : vector<8x128xi1>, vector<8x128xf32>
    %c0_20 = arith.constant 0 : index
    %c0_21 = arith.constant 0 : index
    %41 = vector.load %arg7[%c0_20, %c0_21] : memref<8x128xf32, #tpu.memory_space<vmem>>, vector<8x128xf32>
    tpu.vector_store %arg7[%c0_20, %c0_21], %40 {strides = array<i32>} : memref<8x128xf32, #tpu.memory_space<vmem>>, vector<8x128xf32>,
    return
  }
  func.func @transform_0(%arg0: i32) -> (i32, i32) {
    %c0_i32 = arith.constant 0 : i32
    %c0_i32_0 = arith.constant 0 : i32
    return %arg0, %c0_i32 : i32, i32
  }
  func.func @transform_1(%arg0: i32) -> (i32, i32) {
    %c0_i32 = arith.constant 0 : i32
    %c0_i32_0 = arith.constant 0 : i32
    %c0_i32_1 = arith.constant 0 : i32
    return %c0_i32, %c0_i32_0 : i32, i32
  }
  func.func @transform_2(%arg0: i32) -> (i32, i32) {
    %c0_i32 = arith.constant 0 : i32
    %c0_i32_0 = arith.constant 0 : i32
    %c0_i32_1 = arith.constant 0 : i32
    return %c0_i32, %c0_i32_0 : i32, i32
  }
  func.func @transform_3(%arg0: i32) -> (i32, i32) {
    %c0_i32 = arith.constant 0 : i32
    %c0_i32_0 = arith.constant 0 : i32
    %c0_i32_1 = arith.constant 0 : i32
    return %c0_i32, %c0_i32_0 : i32, i32
  }
  func.func @transform_4(%arg0: i32) -> (i32, i32) {
    %c0_i32 = arith.constant 0 : i32
    %c0_i32_0 = arith.constant 0 : i32
    %c0_i32_1 = arith.constant 0 : i32
    return %c0_i32, %c0_i32_0 : i32, i32
  }
  func.func @transform_5(%arg0: i32) -> (i32, i32) {
    %c0_i32 = arith.constant 0 : i32
    %c0_i32_0 = arith.constant 0 : i32
    %c0_i32_1 = arith.constant 0 : i32
    return %c0_i32, %c0_i32_0 : i32, i32
  }
  func.func @transform_6(%arg0: i32) -> (i32, i32) {
    %c0_i32 = arith.constant 0 : i32
    %c0_i32_0 = arith.constant 0 : i32
    return %arg0, %c0_i32 : i32, i32
  }
}

</mosaic_0001>

<llo_original>
// kernel: dueling_forward.1
$region0: #{dueling_forward.1}
  #allocation0 [shape = 'u32[]', space=smem, size = 0x4, offset = 0x4, fixed_abs, tag = 'smem constant byte address 0x4 - core index']
  #allocation1 [shape = 'u32[72,128]{1,0:T(1,128)}', space=vmem, size = 0x9000, scoped, tag = 'internal scratch']
  %s0 = inlined_call_operand.vmem [shape: f32[8,16], index: 0, kind: input, shape index: {}]
  %s1 = inlined_call_operand.vmem [shape: bf16[16,128], index: 1, kind: input, shape index: {}]
  %s2 = inlined_call_operand.hbm [shape: bf16[128,128], index: 2, kind: input, shape index: {}]
  %s3 = inlined_call_operand.hbm [shape: bf16[128,128], index: 3, kind: input, shape index: {}]
  %s4 = inlined_call_operand.hbm [shape: bf16[128,128], index: 4, kind: input, shape index: {}]
  %s5 = inlined_call_operand.vmem [shape: f32[3,128], index: 5, kind: input, shape index: {}]
  %s6 = inlined_call_operand.vmem [shape: f32[8,128], index: 6, kind: output, shape index: {}]
  %s7 = sld [smem:[#allocation0]]
  $region46: #{dueling_forward.1} parent=0
    _
  %s9 = ssub.s32 1, %s7
  %s10 = scalar_select 0, %s9, %s7
  $region1: #{dueling_forward.1} parent=0
    #allocation2 [shape = 'u8[32768]{0}', space=vmem, size = 0x8000, scoped, tag = 'input window, operand 2, single buffered']
    #allocation3 [shape = 's32[1]{0}', space=sflag, size = 0x4, scoped, tag = 'scoped memory for dueling_forward.1']
    #allocation4 [shape = 'u8[32768]{0}', space=vmem, size = 0x8000, scoped, tag = 'input window, operand 3, single buffered']
    #allocation5 [shape = 's32[1]{0}', space=sflag, size = 0x4, scoped, tag = 'scoped memory for dueling_forward.1']
    #allocation6 [shape = 'u8[32768]{0}', space=vmem, size = 0x8000, scoped, tag = 'input window, operand 4, single buffered']
    %11 = vsyncpa [#allocation3], 0
    %12 = vsyncpa [#allocation5], 0
    // Predicated region
    $region2: #{dueling_forward.1} parent=1 // pred_check
      _
    $region3: #{dueling_forward.1} parent=1 // pred_check_branch
      %14 = sbr.rel (0) target = $region5
    $region4: #{dueling_forward.1} parent=1 // pred_region
      _
    $region5: #{dueling_forward.1} parent=1 // pred_fallthru
      _
    // Predicated region
    $region6: #{dueling_forward.1} parent=1 // pred_check
      _
    $region7: #{dueling_forward.1} parent=1 // pred_check_branch
      %16 = sbr.rel (0) target = $region9
    $region8: #{dueling_forward.1} parent=1 // pred_region
      _
    $region9: #{dueling_forward.1} parent=1 // pred_fallthru
      _
    // Predicated region
    $region10: #{dueling_forward.1} parent=1 // pred_check
      _
    $region11: #{dueling_forward.1} parent=1 // pred_check_branch
      %18 = sbr.rel (0) target = $region13
    $region12: #{dueling_forward.1} parent=1 // pred_region
      %20 = vsyncadd [#allocation3], 0
      %s21 = sshll.u32 %s2, 4
      %s22 = int_to_ptr.hbm [resolvable:$true] %s21
      %s23 = sshll.u32 [#allocation2], 4
      %s24 = int_to_ptr.vmem [resolvable:$true] %s23
      %29 = dma.hbm_to_vmem [thread:$0]  %s22, 1024, %s24, [#allocation3], 64, 64, 4
    $region13: #{dueling_forward.1} parent=1 // pred_fallthru
      _
    // Predicated region
    $region14: #{dueling_forward.1} parent=1 // pred_check
      _
    $region15: #{dueling_forward.1} parent=1 // pred_check_branch
      %31 = sbr.rel (0) target = $region17
    $region16: #{dueling_forward.1} parent=1 // pred_region
      %33 = vsyncadd [#allocation5], 0
      %s34 = sshll.u32 %s3, 4
      %s35 = int_to_ptr.hbm [resolvable:$true] %s34
      %s36 = sshll.u32 [#allocation4], 4
      %s37 = int_to_ptr.vmem [resolvable:$true] %s36
      %42 = dma.hbm_to_vmem [thread:$0]  %s35, 1024, %s37, [#allocation5], 64, 64, 4
    $region17: #{dueling_forward.1} parent=1 // pred_fallthru
      _
    // Predicated region
    $region18: #{dueling_forward.1} parent=1 // pred_check
      _
    $region19: #{dueling_forward.1} parent=1 // pred_check_branch
      %44 = sbr.rel (0) target = $region21
    $region20: #{dueling_forward.1} parent=1 // pred_region
      %46 = vsyncadd [#allocation5], 0
      %s47 = sshll.u32 %s4, 4
      %s48 = int_to_ptr.hbm [resolvable:$true] %s47
      %s49 = sshll.u32 [#allocation6], 4
      %s50 = int_to_ptr.vmem [resolvable:$true] %s49
      %55 = dma.hbm_to_vmem [thread:$0]  %s48, 1024, %s50, [#allocation5], 64, 64, 4
    $region21: #{dueling_forward.1} parent=1 // pred_fallthru
      _
    // Predicated region
    $region22: #{dueling_forward.1} parent=1 // pred_check
      _
    $region23: #{dueling_forward.1} parent=1 // pred_check_branch
      %57 = sbr.rel (0) target = $region25
    $region24: #{dueling_forward.1} parent=1 // pred_region
      _
    $region25: #{dueling_forward.1} parent=1 // pred_fallthru
      _
    // Predicated region
    $region26: #{dueling_forward.1} parent=1 // pred_check
      _
    $region27: #{dueling_forward.1} parent=1 // pred_check_branch
      %59 = sbr.rel (0) target = $region29
    $region28: #{dueling_forward.1} parent=1 // pred_region
      %61 = dma.done [#allocation3], 1024
    $region29: #{dueling_forward.1} parent=1 // pred_fallthru
      _
    // Predicated region
    $region30: #{dueling_forward.1} parent=1 // pred_check
      _
    $region31: #{dueling_forward.1} parent=1 // pred_check_branch
      %63 = sbr.rel (0) target = $region33
    $region32: #{dueling_forward.1} parent=1 // pred_region
      %65 = dma.done [#allocation5], 1024
    $region33: #{dueling_forward.1} parent=1 // pred_fallthru
      _
    // Predicated region
    $region34: #{dueling_forward.1} parent=1 // pred_check
      _
    $region35: #{dueling_forward.1} parent=1 // pred_check_branch
      %67 = sbr.rel (0) target = $region37
    $region36: #{dueling_forward.1} parent=1 // pred_region
      %69 = dma.done [#allocation5], 1024
    $region37: #{dueling_forward.1} parent=1 // pred_fallthru
      _
    %v71 = vld [vmem:[%s0] sm:$0xff]
    %v72 = vpack.c.bf16 %v71, %v71
    %v73 = vld [vmem:[%s1] sm:$0xf]
    %v74 = vld [vmem:[%s1 + $0x4] sm:$0xf]
    %v77 = vunpack.c.l.b16 %v73
    %v78 = vunpack.c.l.b16 %v74
    %v79 = vpack.c.b16 %v78, %v77
    %vm81 = vcmask 130048
    %v83 = vsel %vm81, %v72, 0
    %85 = vmatpush.bf16.msra.mxu0 0
    %86 = vmatpush.bf16.msra.mxu0 0
    %87 = vmatpush.bf16.msra.mxu0 0
    %88 = vmatpush.bf16.msra.mxu0 0
    %89 = vmatpush.bf16.msra.mxu0 0
    %90 = vmatpush.bf16.msra.mxu0 0
    %91 = vmatpush.bf16.msra.mxu0 0
    %92 = vmatpush.bf16.msra.mxu0 %v79
    %93 = vmatmul.bf16.gmra.mxu0 %v83
    %v94 = vpop.f32.mrf.mxu0
    %v95 = vadd.f32 0.0, %v94
    %v96 = vpop.f32.mrf.mxu0
    %97 = vdwg.mxu0
    %v98 = vlaneseq
    %v99 = vand.u32 %v98, 127
    %v100 = vand.u32 %v99, 7
    %v101 = vcvt.s32.f32 %v100
    %vm102 = vcmp.eq.f32.partialorder %v95, %v101
    %v103 = vsel %vm102, 1.0, 0.0
    %v104 = vpack.c.bf16 %v103, %v103
    %v105 = vld [vmem:[#allocation2] sm:$0xf]
    %v106 = vld [vmem:[#allocation2 + $0x4] sm:$0xf]
    %v107 = vld [vmem:[#allocation2 + $0x8] sm:$0xf]
    %v108 = vld [vmem:[#allocation2 + $0xc] sm:$0xf]
    %v109 = vld [vmem:[#allocation2 + $0x10] sm:$0xf]
    %v110 = vld [vmem:[#allocation2 + $0x14] sm:$0xf]
    %v111 = vld [vmem:[#allocation2 + $0x18] sm:$0xf]
    %v112 = vld [vmem:[#allocation2 + $0x1c] sm:$0xf]
    %v113 = vld [vmem:[#allocation2 + $0x20] sm:$0xf]
    %v114 = vld [vmem:[#allocation2 + $0x24] sm:$0xf]
    %v115 = vld [vmem:[#allocation2 + $0x28] sm:$0xf]
    %v116 = vld [vmem:[#allocation2 + $0x2c] sm:$0xf]
    %v117 = vld [vmem:[#allocation2 + $0x30] sm:$0xf]
    %v118 = vld [vmem:[#allocation2 + $0x34] sm:$0xf]
    %v119 = vld [vmem:[#allocation2 + $0x38] sm:$0xf]
    %v120 = vld [vmem:[#allocation2 + $0x3c] sm:$0xf]
    %v121 = vld [vmem:[%s5] sm:$0x1]
    %v122 = vperm.slane %v121, 0
    %v139 = vunpack.c.l.b16 %v105
    %v140 = vunpack.c.l.b16 %v106
    %v141 = vunpack.c.l.b16 %v107
    %v142 = vunpack.c.l.b16 %v108
    %v143 = vunpack.c.l.b16 %v109
    %v144 = vunpack.c.l.b16 %v110
    %v145 = vunpack.c.l.b16 %v111
    %v146 = vunpack.c.l.b16 %v112
    %v147 = vunpack.c.l.b16 %v113
    %v148 = vunpack.c.l.b16 %v114
    %v149 = vunpack.c.l.b16 %v115
    %v150 = vunpack.c.l.b16 %v116
    %v151 = vunpack.c.l.b16 %v117
    %v152 = vunpack.c.l.b16 %v118
    %v153 = vunpack.c.l.b16 %v119
    %v154 = vunpack.c.l.b16 %v120
    %v155 = vpack.c.b16 %v140, %v139
    %v156 = vpack.c.b16 %v142, %v141
    %v157 = vpack.c.b16 %v144, %v143
    %v158 = vpack.c.b16 %v146, %v145
    %v159 = vpack.c.b16 %v148, %v147
    %v160 = vpack.c.b16 %v150, %v149
    %v161 = vpack.c.b16 %v152, %v151
    %v162 = vpack.c.b16 %v154, %v153
    %171 = vmatpush.bf16.msra.mxu0 %v162
    %172 = vmatpush.bf16.msra.mxu0 %v161
    %173 = vmatpush.bf16.msra.mxu0 %v160
    %174 = vmatpush.bf16.msra.mxu0 %v159
    %175 = vmatpush.bf16.msra.mxu0 %v158
    %176 = vmatpush.bf16.msra.mxu0 %v157
    %177 = vmatpush.bf16.msra.mxu0 %v156
    %178 = vmatpush.bf16.msra.mxu0 %v155
    %179 = vmatmul.bf16.gmra.mxu0 %v104
    %v180 = vpop.f32.mrf.mxu0
    %v181 = vadd.f32 %v122, %v180
    %v182 = vpop.f32.mrf.mxu0
    %183 = vdwg.mxu0
    %v184 = vmax.f32 %v181, 0.0
    %v185 = vpack.c.bf16 %v184, %v184
    %v186 = vld [vmem:[#allocation4] sm:$0xf]
    %v187 = vld [vmem:[#allocation4 + $0x4] sm:$0xf]
    %v188 = vld [vmem:[#allocation4 + $0x8] sm:$0xf]
    %v189 = vld [vmem:[#allocation4 + $0xc] sm:$0xf]
    %v190 = vld [vmem:[#allocation4 + $0x10] sm:$0xf]
    %v191 = vld [vmem:[#allocation4 + $0x14] sm:$0xf]
    %v192 = vld [vmem:[#allocation4 + $0x18] sm:$0xf]
    %v193 = vld [vmem:[#allocation4 + $0x1c] sm:$0xf]
    %v194 = vld [vmem:[#allocation4 + $0x20] sm:$0xf]
    %v195 = vld [vmem:[#allocation4 + $0x24] sm:$0xf]
    %v196 = vld [vmem:[#allocation4 + $0x28] sm:$0xf]
    %v197 = vld [vmem:[#allocation4 + $0x2c] sm:$0xf]
    %v198 = vld [vmem:[#allocation4 + $0x30] sm:$0xf]
    %v199 = vld [vmem:[#allocation4 + $0x34] sm:$0xf]
    %v200 = vld [vmem:[#allocation4 + $0x38] sm:$0xf]
    %v201 = vld [vmem:[#allocation4 + $0x3c] sm:$0xf]
    %v202 = vld [vmem:[%s5 + $0x1] sm:$0x1]
    %v203 = vperm.slane %v202, 0
    %v220 = vunpack.c.l.b16 %v186
    %v221 = vunpack.c.l.b16 %v187
    %v222 = vunpack.c.l.b16 %v188
    %v223 = vunpack.c.l.b16 %v189
    %v224 = vunpack.c.l.b16 %v190
    %v225 = vunpack.c.l.b16 %v191
    %v226 = vunpack.c.l.b16 %v192
    %v227 = vunpack.c.l.b16 %v193
    %v228 = vunpack.c.l.b16 %v194
    %v229 = vunpack.c.l.b16 %v195
    %v230 = vunpack.c.l.b16 %v196
    %v231 = vunpack.c.l.b16 %v197
    %v232 = vunpack.c.l.b16 %v198
    %v233 = vunpack.c.l.b16 %v199
    %v234 = vunpack.c.l.b16 %v200
    %v235 = vunpack.c.l.b16 %v201
    %v236 = vpack.c.b16 %v221, %v220
    %v237 = vpack.c.b16 %v223, %v222
    %v238 = vpack.c.b16 %v225, %v224
    %v239 = vpack.c.b16 %v227, %v226
    %v240 = vpack.c.b16 %v229, %v228
    %v241 = vpack.c.b16 %v231, %v230
    %v242 = vpack.c.b16 %v233, %v232
    %v243 = vpack.c.b16 %v235, %v234
    %252 = vmatpush.bf16.msra.mxu0 %v243
    %253 = vmatpush.bf16.msra.mxu0 %v242
    %254 = vmatpush.bf16.msra.mxu0 %v241
    %255 = vmatpush.bf16.msra.mxu0 %v240
    %256 = vmatpush.bf16.msra.mxu0 %v239
    %257 = vmatpush.bf16.msra.mxu0 %v238
    %258 = vmatpush.bf16.msra.mxu0 %v237
    %259 = vmatpush.bf16.msra.mxu0 %v236
    %260 = vmatmul.bf16.gmra.mxu0 %v185
    %v261 = vpop.f32.mrf.mxu0
    %v262 = vadd.f32 %v203, %v261
    %v263 = vpop.f32.mrf.mxu0
    %264 = vdwg.mxu0
    %v265 = vmax.f32 %v262, 0.0
    %v266 = vpack.c.bf16 %v265, %v265
    %v267 = vld [vmem:[%s5 + $0x2] sm:$0x1]
    %v268 = vld [vmem:[#allocation6] sm:$0xf]
    %v269 = vld [vmem:[#allocation6 + $0x4] sm:$0xf]
    %v270 = vld [vmem:[#allocation6 + $0x8] sm:$0xf]
    %v271 = vld [vmem:[#allocation6 + $0xc] sm:$0xf]
    %v272 = vld [vmem:[#allocation6 + $0x10] sm:$0xf]
    %v273 = vld [vmem:[#allocation6 + $0x14] sm:$0xf]
    %v274 = vld [vmem:[#allocation6 + $0x18] sm:$0xf]
    %v275 = vld [vmem:[#allocation6 + $0x1c] sm:$0xf]
    %v276 = vld [vmem:[#allocation6 + $0x20] sm:$0xf]
    %v277 = vld [vmem:[#allocation6 + $0x24] sm:$0xf]
    %v278 = vld [vmem:[#allocation6 + $0x28] sm:$0xf]
    %v279 = vld [vmem:[#allocation6 + $0x2c] sm:$0xf]
    %v280 = vld [vmem:[#allocation6 + $0x30] sm:$0xf]
    %v281 = vld [vmem:[#allocation6 + $0x34] sm:$0xf]
    %v282 = vld [vmem:[#allocation6 + $0x38] sm:$0xf]
    %v283 = vld [vmem:[#allocation6 + $0x3c] sm:$0xf]
    %v284 = vperm.slane %v267, 0
    %v301 = vunpack.c.l.b16 %v268
    %v302 = vunpack.c.l.b16 %v269
    %v303 = vunpack.c.l.b16 %v270
    %v304 = vunpack.c.l.b16 %v271
    %v305 = vunpack.c.l.b16 %v272
    %v306 = vunpack.c.l.b16 %v273
    %v307 = vunpack.c.l.b16 %v274
    %v308 = vunpack.c.l.b16 %v275
    %v309 = vunpack.c.l.b16 %v276
    %v310 = vunpack.c.l.b16 %v277
    %v311 = vunpack.c.l.b16 %v278
    %v312 = vunpack.c.l.b16 %v279
    %v313 = vunpack.c.l.b16 %v280
    %v314 = vunpack.c.l.b16 %v281
    %v315 = vunpack.c.l.b16 %v282
    %v316 = vunpack.c.l.b16 %v283
    %v317 = vpack.c.b16 %v302, %v301
    %v318 = vpack.c.b16 %v304, %v303
    %v319 = vpack.c.b16 %v306, %v305
    %v320 = vpack.c.b16 %v308, %v307
    %v321 = vpack.c.b16 %v310, %v309
    %v322 = vpack.c.b16 %v312, %v311
    %v323 = vpack.c.b16 %v314, %v313
    %v324 = vpack.c.b16 %v316, %v315
    %333 = vmatpush.bf16.msra.mxu0 %v324
    %334 = vmatpush.bf16.msra.mxu0 %v323
    %335 = vmatpush.bf16.msra.mxu0 %v322
    %336 = vmatpush.bf16.msra.mxu0 %v321
    %337 = vmatpush.bf16.msra.mxu0 %v320
    %338 = vmatpush.bf16.msra.mxu0 %v319
    %339 = vmatpush.bf16.msra.mxu0 %v318
    %340 = vmatpush.bf16.msra.mxu0 %v317
    %341 = vmatmul.bf16.gmra.mxu0 %v266
    %v342 = vpop.f32.mrf.mxu0
    %v343 = vadd.f32 %v284, %v342
    %v344 = vpop.f32.mrf.mxu0
    %345 = vdwg.mxu0
    %vm346 = vcmp.ge.s32.totalorder %v99, 1
    %348 = vset.pattern.permute.xlu0 0
    %349 = vperm.xlu0 %348, %v343
    %v350 = vpop.permute.xlu0 %349
    %v352 = vadd.f32 %v343, %v350
    %v353 = vsel %vm346, %v352, %v343
    %354 = vst [vmem:[%s6] sm:$0xff] %v353
    // Predicated region
    $region38: #{dueling_forward.1} parent=1 // pred_check
      _
    $region39: #{dueling_forward.1} parent=1 // pred_check_branch
      %356 = sbr.rel (0) target = $region41
    $region40: #{dueling_forward.1} parent=1 // pred_region
      _
    $region41: #{dueling_forward.1} parent=1 // pred_fallthru
      _
    // Predicated region
    $region42: #{dueling_forward.1} parent=1 // pred_check
      _
    $region43: #{dueling_forward.1} parent=1 // pred_check_branch
      %358 = sbr.rel (0) target = $region45
    $region44: #{dueling_forward.1} parent=1 // pred_region
      _
    $region45: #{dueling_forward.1} parent=1 // pred_fallthru
      _
    %359 = vsyncpa [#allocation3], 1
    %360 = vsyncpa [#allocation5], 1

</llo_original>
